<compile_context>
chip_gen: v7x
topology: tpu7x:2x2x1
jax: 0.10.0
libtpu: 0.0.40
codegen_flags: <defaults>
</compile_context>

<pallas_src>
import functools

import jax
import jax.numpy as jnp
from jax.experimental import pallas as pl
from jax.experimental.pallas import tpu as pltpu

GROUP_SIZE = 4
EPS = 1e-8


# --------------------------------------------------------------------------- #
# Kernels
# --------------------------------------------------------------------------- #
def _bsc_fused_kernel(x_ref, o_ref, *, chw, hw, eps):
    """Whole feature axis resident in the block; one unmasked full-tile store."""
    G, tm, _ = x_ref.shape
    xg = x_ref[...].astype(jnp.float32)                       # [G, tm, CHW]
    mean_g = jnp.mean(xg, axis=0, keepdims=True)               # [1, tm, CHW]
    xc = xg - mean_g                                           # torch's in-place centering
    var = jnp.mean(xc * xc, axis=0)                            # [tm, CHW]  (biased)
    std = jnp.sqrt(var + eps)                                  # EUP
    std_m = jnp.sum(std, axis=-1, keepdims=True) * (1.0 / chw)  # [tm, 1]
    std_tile = jnp.broadcast_to(std_m[None, :, :], (G, tm, hw))
    # Single lane-dense store of the concatenated tile (no masked vst at lane
    # offset chw when chw % 128 != 0 or hw < 128).
    o_ref[...] = jnp.concatenate([xc, std_tile], axis=-1).astype(o_ref.dtype)


def _bsc_tiled_kernel(x_ref, o_ref, acc_ref, *, nk_in, chw, eps):
    """Feature-tiled path.

    Grid axis k runs over (C+1)*HW // tf lane-dense output blocks:
      k <  nk_in : x-feature blocks -> write centered x, accumulate sum(std).
      k >= nk_in : std blocks       -> broadcast the finished per-slot scalar.
    """
    k = pl.program_id(1)
    G, tm, tf = o_ref.shape

    @pl.when(k == 0)
    def _init():
        acc_ref[...] = jnp.zeros_like(acc_ref)

    @pl.when(k < nk_in)
    def _x_block():
        xg = x_ref[...].astype(jnp.float32)                    # [G, tm, tf]
        mean_g = jnp.mean(xg, axis=0, keepdims=True)
        xc = xg - mean_g
        var = jnp.mean(xc * xc, axis=0)                        # [tm, tf]
        std = jnp.sqrt(var + eps)
        acc_ref[...] += jnp.sum(std, axis=-1, keepdims=True)   # [tm, 1]
        o_ref[...] = xc.astype(o_ref.dtype)

    @pl.when(k >= nk_in)
    def _std_block():
        std_m = acc_ref[...] * (1.0 / chw)                     # [tm, 1]
        o_ref[...] = jnp.broadcast_to(
            std_m[None, :, :], (G, tm, tf)).astype(o_ref.dtype)


# --------------------------------------------------------------------------- #
# Tiling / budgeting helpers
# --------------------------------------------------------------------------- #
def _round_up(a, b):
    return -(-a // b) * b


def _vmem_budget():
    """(vmem_limit_bytes, planning_budget_bytes) for the current generation."""
    cap = None
    try:
        info = pltpu.get_tpu_info()
        cap = getattr(info, "vmem_capacity_bytes", None)
    except Exception:
        cap = None
    if not cap:
        cap = 64 << 20                        # conservative: assume v7x-class VMEM
    if cap >= 96 << 20:                        # v5e / v6e: 128 MiB physical
        vmem_limit = 100 << 20
    else:                                      # v7x-class: 64 MiB physical
        vmem_limit = min(48 << 20, (cap * 3) // 4)
    budget = (vmem_limit * 3) // 4             # headroom for compiler temps
    return int(vmem_limit), int(budget)


def _step_bytes(G, tm, tf_in, tf_out, in_b, out_b):
    """Per-grid-step VMEM footprint: double-buffered DMA + f32 intermediates."""
    io = 2 * G * tm * tf_in * in_b + 2 * G * tm * tf_out * out_b
    f32 = 3 * G * tm * max(tf_in, tf_out) * 4   # xg / xc / staged tile in f32
    return io + f32


def _pick_tm(M, per_tm_bytes, budget, target_m_steps):
    """Largest multiple-of-8 row tile that fits the budget, capped so the
    parallel M axis keeps >= target_m_steps grid steps when M allows."""
    if M < 8:
        return M                               # block dim == full dim is legal
    cap = M
    if target_m_steps > 1 and M >= 8 * target_m_steps:
        cap = min(M, _round_up(-(-M // target_m_steps), 8))
    fit = budget // max(per_tm_bytes, 1)
    tm = min(cap, int(fit))
    tm -= tm % 8
    return max(tm, 8)                          # smallest legal sublane tile


# --------------------------------------------------------------------------- #
# Wrapper
# --------------------------------------------------------------------------- #
def batch_std_concat(x, group_size=GROUP_SIZE, mode="auto"):
    """x: [N, C, H, W] (f32 or bf16) -> [N, C+1, H, W], same dtype.

    mode: "auto"  - fused if the full feature axis fits VMEM, else tiled.
          "fused" - whole C*H*W per block (one grid axis over M).
          "tiled" - feature axis tiled with a per-slot std accumulator.
    """
    N, C, H, W = x.shape
    G = group_size
    assert N % G == 0, "batch must be divisible by groupSize"
    # TODO(synk): some PGGAN variants use groupSize=min(groupSize, N); the
    # original module (and this kernel) requires divisibility instead.
    M = N // G
    HW = H * W
    CHW = C * HW
    FOUT = CHW + HW

    in_b = jnp.dtype(x.dtype).itemsize
    out_b = in_b
    vmem_limit, budget = _vmem_budget()

    # Keep >=4 M-steps for pipelining / >=2 for v7x's two TensorCores when
    # M is large enough; a single step is unavoidable for tiny M.
    target_m_steps = 4 if M >= 32 else (2 if M >= 16 else 1)

    min_tm = M if M < 8 else 8
    fused_per_tm = _step_bytes(G, 1, CHW, FOUT, in_b, out_b)
    fused_fits = fused_per_tm * min_tm <= budget

    use_fused = (mode == "fused") or (mode == "auto" and fused_fits)
    if not use_fused and HW % 128 != 0:
        # TODO(synk): the tiled path needs a lane-aligned tile dividing H*W;
        # for odd spatial sizes fall back to the fused path (best effort).
        use_fused = True

    xg = x.reshape(G, M, CHW)                  # pure view of NCHW: n = g*M + m
    out_dtype = x.dtype

    if use_fused:
        tm = _pick_tm(M, fused_per_tm, budget, target_m_steps)
        grid = (pl.cdiv(M, tm),)
        kernel = functools.partial(_bsc_fused_kernel, chw=CHW, hw=HW, eps=EPS)
        in_specs = [pl.BlockSpec((G, tm, CHW), lambda i: (0, i, 0))]
        out_specs = pl.BlockSpec((G, tm, FOUT), lambda i: (0, i, 0))
        scratch_shapes = []
        dim_sems = ("parallel",)
    else:
        # Largest lane-aligned (multiple of 128) feature tile tf | HW; since
        # tf | HW it also divides C*HW and (C+1)*HW, so the x blocks end
        # exactly at CHW and the std blocks tile [CHW, CHW+HW).
        tf_cands = [d for d in range(HW, 127, -128) if HW % d == 0]
        tf = None
        for cand in tf_cands:
            if _step_bytes(G, min_tm, cand, cand, in_b, out_b) <= budget:
                tf = cand
                break
        if tf is None:
            tf = tf_cands[-1] if tf_cands else 128   # best effort, smallest tile
        per_tm = _step_bytes(G, 1, tf, tf, in_b, out_b)
        tm = _pick_tm(M, per_tm, budget, target_m_steps)
        nk_in = CHW // tf
        nk_out = FOUT // tf
        grid = (pl.cdiv(M, tm), nk_out)
        kernel = functools.partial(_bsc_tiled_kernel, nk_in=nk_in, chw=CHW, eps=EPS)
        # Input index clamps at the last x block for the std steps (no re-DMA).
        in_specs = [pl.BlockSpec(
            (G, tm, tf), lambda i, k: (0, i, jnp.minimum(k, nk_in - 1)))]
        out_specs = pl.BlockSpec((G, tm, tf), lambda i, k: (0, i, k))
        scratch_shapes = [pltpu.VMEM((tm, 1), jnp.float32)]
        dim_sems = ("parallel", "arbitrary")

    out = pl.pallas_call(
        kernel,
        out_shape=jax.ShapeDtypeStruct((G, M, FOUT), out_dtype),
        grid=grid,
        in_specs=in_specs,
        out_specs=out_specs,
        scratch_shapes=scratch_shapes,
        compiler_params=pltpu.CompilerParams(
            dimension_semantics=dim_sems,
            vmem_limit_bytes=vmem_limit,
        ),
        cost_estimate=pl.CostEstimate(
            flops=5 * N * CHW,                  # center + square + accumulate
            transcendentals=M * CHW,            # sqrt per (m, feature)
            bytes_accessed=N * CHW * in_b + N * FOUT * out_b,
        ),
    )(xg)

    # [G, M, (C+1)*HW] is a contiguous view of [N, C+1, H, W] (n = g*M + m).
    return out.reshape(N, C + 1, H, W)


# --------------------------------------------------------------------------- #
# Pure-JAX reference (mirrors the PyTorch forward, incl. the in-place view op)
# --------------------------------------------------------------------------- #
def batch_std_concat_ref(x, group_size=GROUP_SIZE):
    N, C, H, W = x.shape
    G = group_size
    M = N // G
    xg = x.astype(jnp.float32).reshape(G, M, C, H, W)
    mean_g = jnp.mean(xg, axis=0, keepdims=True)
    xc = xg - mean_g                                   # torch mutates x here
    var = jnp.mean(xc ** 2, axis=0)                    # [M, C, H, W]
    std = jnp.sqrt(var + EPS)
    std_m = jnp.mean(std.reshape(M, -1), axis=1)       # [M]
    std_rep = jnp.tile(std_m.reshape(M, 1, 1, 1), (G, 1, H, W))   # [N, 1, H, W]
    x_after = xc.reshape(N, C, H, W)
    return jnp.concatenate([x_after, std_rep], axis=1)


if __name__ == "__main__":
    key = jax.random.PRNGKey(0)
    N, C, H, W = 8, 4, 16, 16              # N divisible by groupSize=4
    x = jax.random.normal(key, (N, C, H, W), dtype=jnp.float32)

    ref = jax.block_until_ready(batch_std_concat_ref(x))

    # Auto path (fused: full feature axis per block, single unmasked store).
    out = jax.block_until_ready(batch_std_concat(x))
    assert out.shape == (N, C + 1, H, W) and out.dtype == x.dtype, (out.shape, out.dtype)
    assert jnp.allclose(out, ref, atol=1e-5, rtol=1e-5), (
        float(jnp.max(jnp.abs(out - ref))))

    # Feature-tiled path (what large PGGAN stages would use); forced here so the
    # accumulator / std-slab branch is exercised and validated.
    out_t = jax.block_until_ready(batch_std_concat(x, mode="tiled"))
    assert out_t.shape == (N, C + 1, H, W) and out_t.dtype == x.dtype
    assert jnp.allclose(out_t, ref, atol=1e-5, rtol=1e-5), (
        float(jnp.max(jnp.abs(out_t - ref))))

    # Native bf16 I/O path (half the HBM traffic; math stays f32 in-register).
    x16 = x.astype(jnp.bfloat16)
    out16 = jax.block_until_ready(batch_std_concat(x16))
    assert out16.shape == (N, C + 1, H, W) and out16.dtype == jnp.bfloat16
    assert bool(jnp.all(jnp.isfinite(out16.astype(jnp.float32))))

    print("KERNEL_OK")
</pallas_src>

<mosaic_0001>
module attributes {stable_mosaic.version = 11 : i64} {
  func.func @_bsc_fused_kernel(%arg0: i32, %arg1: memref<4x2x1024xf32, #tpu.memory_space<vmem>>, %arg2: memref<4x2x1280xf32, #tpu.memory_space<vmem>>) attributes {dimension_semantics = [#tpu.dimension_semantics<parallel>], iteration_bounds = array<i64: 1>, scalar_prefetch = 0 : i64, scratch_operands = 0 : i64, tpu.core_type = #tpu.core_type<tc>, window_params = [{transform_indices = @transform_0, window_bounds = array<i64: 4, 2, 1024>}, {transform_indices = @transform_1, window_bounds = array<i64: 4, 2, 1280>}]} {
    %c0 = arith.constant 0 : index
    %c0_0 = arith.constant 0 : index
    %c0_1 = arith.constant 0 : index
    %0 = vector.load %arg1[%c0, %c0_0, %c0_1] : memref<4x2x1024xf32, #tpu.memory_space<vmem>>, vector<4x2x1024xf32>
    %cst = arith.constant dense<0.000000e+00> : vector<2x1024xf32>
    %1 = vector.multi_reduction <add>, %0, %cst [0] : vector<4x2x1024xf32> to vector<2x1024xf32>
    %2 = vector.shape_cast %1 : vector<2x1024xf32> to vector<1x2x1024xf32>
    %cst_2 = arith.constant 4.000000e+00 : f32
    %3 = vector.broadcast %cst_2 : f32 to vector<1x2x1024xf32>
    %4 = arith.divf %2, %3 : vector<1x2x1024xf32>
    %5 = vector.broadcast %4 : vector<1x2x1024xf32> to vector<4x2x1024xf32>
    %6 = arith.subf %0, %5 : vector<4x2x1024xf32>
    %7 = arith.mulf %6, %6 : vector<4x2x1024xf32>
    %cst_3 = arith.constant dense<0.000000e+00> : vector<2x1024xf32>
    %8 = vector.multi_reduction <add>, %7, %cst_3 [0] : vector<4x2x1024xf32> to vector<2x1024xf32>
    %cst_4 = arith.constant 4.000000e+00 : f32
    %9 = vector.broadcast %cst_4 : f32 to vector<2x1024xf32>
    %10 = arith.divf %8, %9 : vector<2x1024xf32>
    %cst_5 = arith.constant 9.99999993E-9 : f32
    %11 = vector.broadcast %cst_5 : f32 to vector<2x1024xf32>
    %12 = arith.addf %10, %11 : vector<2x1024xf32>
    %13 = math.sqrt %12 : vector<2x1024xf32>
    %cst_6 = arith.constant dense<0.000000e+00> : vector<2xf32>
    %14 = vector.multi_reduction <add>, %13, %cst_6 [1] : vector<2x1024xf32> to vector<2xf32>
    %15 = vector.shape_cast %14 : vector<2xf32> to vector<2x1xf32>
    %cst_7 = arith.constant 9.765625E-4 : f32
    %16 = vector.broadcast %cst_7 : f32 to vector<2x1xf32>
    %17 = arith.mulf %15, %16 : vector<2x1xf32>
    %18 = vector.shape_cast %17 : vector<2x1xf32> to vector<1x2x1xf32>
    %19 = vector.shape_cast %18 : vector<1x2x1xf32> to vector<1x2x1xf32>
    %20 = vector.broadcast %19 : vector<1x2x1xf32> to vector<4x2x256xf32>
    %21 = tpu.concatenate %6, %20 in 2 : vector<4x2x1024xf32>, vector<4x2x256xf32> -> vector<4x2x1280xf32>
    %c0_8 = arith.constant 0 : index
    %c0_9 = arith.constant 0 : index
    %c0_10 = arith.constant 0 : index
    %22 = vector.load %arg2[%c0_8, %c0_9, %c0_10] : memref<4x2x1280xf32, #tpu.memory_space<vmem>>, vector<4x2x1280xf32>
    tpu.vector_store %arg2[%c0_8, %c0_9, %c0_10], %21 {strides = array<i32>} : memref<4x2x1280xf32, #tpu.memory_space<vmem>>, vector<4x2x1280xf32>,
    return
  }
  func.func @transform_0(%arg0: i32) -> (i32, i32, i32) {
    %c0_i32 = arith.constant 0 : i32
    %c0_i32_0 = arith.constant 0 : i32
    %c0_i32_1 = arith.constant 0 : i32
    return %c0_i32, %arg0, %c0_i32_0 : i32, i32, i32
  }
  func.func @transform_1(%arg0: i32) -> (i32, i32, i32) {
    %c0_i32 = arith.constant 0 : i32
    %c0_i32_0 = arith.constant 0 : i32
    %c0_i32_1 = arith.constant 0 : i32
    return %c0_i32, %arg0, %c0_i32_0 : i32, i32, i32
  }
}

</mosaic_0001>

<llo_original>
// kernel: tpu_custom_call.1
$region0: #{tpu_custom_call.1}
  #allocation0 [shape = 'u32[]', space=smem, size = 0x4, offset = 0x4, fixed_abs, tag = 'smem constant byte address 0x4 - core index']
  #allocation1 [shape = 'u32[144,128]{1,0:T(1,128)}', space=vmem, size = 0x12000, scoped, tag = 'internal scratch']
  %s0 = inlined_call_operand.hbm [shape: f32[4,2,1024], index: 0, kind: input, shape index: {}]
  %s1 = inlined_call_operand.hbm [shape: f32[4,2,1280], index: 1, kind: output, shape index: {}]
  %s2 = sld [smem:[#allocation0]]
  $region18: #{tpu_custom_call.1} parent=0
    _
  %s4 = ssub.s32 1, %s2
  %s5 = scalar_select 0, %s4, %s2
  $region1: #{tpu_custom_call.1} parent=0
    #allocation2 [shape = 'u8[32768]{0}', space=vmem, size = 0x8000, scoped, tag = 'input window, operand 0, single buffered']
    #allocation3 [shape = 's32[1]{0}', space=sflag, size = 0x4, scoped, tag = 'scoped memory for tpu_custom_call.1']
    #allocation4 [shape = 's32[1]{0}', space=sflag, size = 0x4, scoped, tag = 'scoped memory for tpu_custom_call.1']
    #allocation5 [shape = 'u8[40960]{0}', space=vmem, size = 0xa000, scoped, tag = 'output window, operand 0, single buffered']
    %6 = vsyncpa [#allocation3], 0
    %7 = vsyncpa [#allocation4], 0
    // Predicated region
    $region2: #{tpu_custom_call.1} parent=1 // pred_check
      _
    $region3: #{tpu_custom_call.1} parent=1 // pred_check_branch
      %9 = sbr.rel (0) target = $region5
    $region4: #{tpu_custom_call.1} parent=1 // pred_region
      %s11 = ssub.s32 1024, 1024
      %12 = vsyncadd [#allocation3], %s11
      %s13 = sshll.u32 [#allocation2], 4
      %s14 = int_to_ptr.vmem [resolvable:$true] %s13
      %19 = dma.hbm_to_vmem [thread:$0]  %s0, 1024, %s14, [#allocation3], 256, 256, 16
    $region5: #{tpu_custom_call.1} parent=1 // pred_fallthru
      _
    // Predicated region
    $region6: #{tpu_custom_call.1} parent=1 // pred_check
      _
    $region7: #{tpu_custom_call.1} parent=1 // pred_check_branch
      %21 = sbr.rel (0) target = $region9
    $region8: #{tpu_custom_call.1} parent=1 // pred_region
      %22 = dma.done [#allocation3], 1024
    $region9: #{tpu_custom_call.1} parent=1 // pred_fallthru
      _
    %v23 = vld [vmem:[#allocation2] sm:$0xff]
    %v24 = vld [vmem:[#allocation2 + $0x8] sm:$0xff]
    %v25 = vld [vmem:[#allocation2 + $0x10] sm:$0xff]
    %v26 = vld [vmem:[#allocation2 + $0x18] sm:$0xff]
    %v27 = vld [vmem:[#allocation2 + $0x20] sm:$0xff]
    %v28 = vld [vmem:[#allocation2 + $0x28] sm:$0xff]
    %v29 = vld [vmem:[#allocation2 + $0x30] sm:$0xff]
    %v30 = vld [vmem:[#allocation2 + $0x38] sm:$0xff]
    %v39 = vcombine.high %v23, %v23
    %v41 = vunpack.c.l.s4 1983009808
    %v42 = vunpack.c.0.s8 %v41
    %v43 = vlaneseq
    %v44 = vshrl.u32 %v43, 7
    %v45 = vsub.s32 %v42, %v44
    %v46 = vrot.slane %v23, %v45
    %v48 = vunpack.c.l.s4 1983009808
    %v49 = vunpack.c.0.s8 %v48
    %v50 = vlaneseq
    %v51 = vshrl.u32 %v50, 7
    %v52 = vsub.s32 %v49, %v51
    %v53 = vrot.slane %v39, %v52
    %v54 = vcombine.high %v46, %v46
    %v55 = vcombine.high %v53, %v53
    %v56 = vcombine.high %v24, %v24
    %v58 = vunpack.c.l.s4 1983009808
    %v59 = vunpack.c.0.s8 %v58
    %v60 = vlaneseq
    %v61 = vshrl.u32 %v60, 7
    %v62 = vsub.s32 %v59, %v61
    %v63 = vrot.slane %v24, %v62
    %v65 = vunpack.c.l.s4 1983009808
    %v66 = vunpack.c.0.s8 %v65
    %v67 = vlaneseq
    %v68 = vshrl.u32 %v67, 7
    %v69 = vsub.s32 %v66, %v68
    %v70 = vrot.slane %v56, %v69
    %v71 = vcombine.high %v63, %v63
    %v72 = vcombine.high %v70, %v70
    %v73 = vcombine.high %v25, %v25
    %v75 = vunpack.c.l.s4 1983009808
    %v76 = vunpack.c.0.s8 %v75
    %v77 = vlaneseq
    %v78 = vshrl.u32 %v77, 7
    %v79 = vsub.s32 %v76, %v78
    %v80 = vrot.slane %v25, %v79
    %v82 = vunpack.c.l.s4 1983009808
    %v83 = vunpack.c.0.s8 %v82
    %v84 = vlaneseq
    %v85 = vshrl.u32 %v84, 7
    %v86 = vsub.s32 %v83, %v85
    %v87 = vrot.slane %v73, %v86
    %v88 = vcombine.high %v80, %v80
    %v89 = vcombine.high %v87, %v87
    %v90 = vcombine.high %v26, %v26
    %v92 = vunpack.c.l.s4 1983009808
    %v93 = vunpack.c.0.s8 %v92
    %v94 = vlaneseq
    %v95 = vshrl.u32 %v94, 7
    %v96 = vsub.s32 %v93, %v95
    %v97 = vrot.slane %v26, %v96
    %v99 = vunpack.c.l.s4 1983009808
    %v100 = vunpack.c.0.s8 %v99
    %v101 = vlaneseq
    %v102 = vshrl.u32 %v101, 7
    %v103 = vsub.s32 %v100, %v102
    %v104 = vrot.slane %v90, %v103
    %v105 = vcombine.high %v97, %v97
    %v106 = vcombine.high %v104, %v104
    %v107 = vcombine.high %v27, %v27
    %v109 = vunpack.c.l.s4 1983009808
    %v110 = vunpack.c.0.s8 %v109
    %v111 = vlaneseq
    %v112 = vshrl.u32 %v111, 7
    %v113 = vsub.s32 %v110, %v112
    %v114 = vrot.slane %v27, %v113
    %v116 = vunpack.c.l.s4 1983009808
    %v117 = vunpack.c.0.s8 %v116
    %v118 = vlaneseq
    %v119 = vshrl.u32 %v118, 7
    %v120 = vsub.s32 %v117, %v119
    %v121 = vrot.slane %v107, %v120
    %v122 = vcombine.high %v114, %v114
    %v123 = vcombine.high %v121, %v121
    %v124 = vcombine.high %v28, %v28
    %v126 = vunpack.c.l.s4 1983009808
    %v127 = vunpack.c.0.s8 %v126
    %v128 = vlaneseq
    %v129 = vshrl.u32 %v128, 7
    %v130 = vsub.s32 %v127, %v129
    %v131 = vrot.slane %v28, %v130
    %v133 = vunpack.c.l.s4 1983009808
    %v134 = vunpack.c.0.s8 %v133
    %v135 = vlaneseq
    %v136 = vshrl.u32 %v135, 7
    %v137 = vsub.s32 %v134, %v136
    %v138 = vrot.slane %v124, %v137
    %v139 = vcombine.high %v131, %v131
    %v140 = vcombine.high %v138, %v138
    %v141 = vcombine.high %v29, %v29
    %v143 = vunpack.c.l.s4 1983009808
    %v144 = vunpack.c.0.s8 %v143
    %v145 = vlaneseq
    %v146 = vshrl.u32 %v145, 7
    %v147 = vsub.s32 %v144, %v146
    %v148 = vrot.slane %v29, %v147
    %v150 = vunpack.c.l.s4 1983009808
    %v151 = vunpack.c.0.s8 %v150
    %v152 = vlaneseq
    %v153 = vshrl.u32 %v152, 7
    %v154 = vsub.s32 %v151, %v153
    %v155 = vrot.slane %v141, %v154
    %v156 = vcombine.high %v148, %v148
    %v157 = vcombine.high %v155, %v155
    %v158 = vcombine.high %v30, %v30
    %v160 = vunpack.c.l.s4 1983009808
    %v161 = vunpack.c.0.s8 %v160
    %v162 = vlaneseq
    %v163 = vshrl.u32 %v162, 7
    %v164 = vsub.s32 %v161, %v163
    %v165 = vrot.slane %v30, %v164
    %v167 = vunpack.c.l.s4 1983009808
    %v168 = vunpack.c.0.s8 %v167
    %v169 = vlaneseq
    %v170 = vshrl.u32 %v169, 7
    %v171 = vsub.s32 %v168, %v170
    %v172 = vrot.slane %v158, %v171
    %v173 = vcombine.high %v165, %v165
    %v174 = vcombine.high %v172, %v172
    %vm207 = vcmask 1041408
    %v208 = vsel %vm207, %v46, 0.0
    %v209 = vsel %vm207, %v80, 0.0
    %v210 = vadd.f32 %v208, %v209
    %v211 = vsel %vm207, %v114, 0.0
    %v212 = vadd.f32 %v210, %v211
    %v213 = vsel %vm207, %v148, 0.0
    %v214 = vadd.f32 %v212, %v213
    %v215 = vsel %vm207, %v54, 0.0
    %v216 = vsel %vm207, %v88, 0.0
    %v217 = vadd.f32 %v215, %v216
    %v218 = vsel %vm207, %v122, 0.0
    %v219 = vadd.f32 %v217, %v218
    %v220 = vsel %vm207, %v156, 0.0
    %v221 = vadd.f32 %v219, %v220
    %v222 = vsel %vm207, %v53, 0.0
    %v223 = vsel %vm207, %v87, 0.0
    %v224 = vadd.f32 %v222, %v223
    %v225 = vsel %vm207, %v121, 0.0
    %v226 = vadd.f32 %v224, %v225
    %v227 = vsel %vm207, %v155, 0.0
    %v228 = vadd.f32 %v226, %v227
    %v229 = vsel %vm207, %v55, 0.0
    %v230 = vsel %vm207, %v89, 0.0
    %v231 = vadd.f32 %v229, %v230
    %v232 = vsel %vm207, %v123, 0.0
    %v233 = vadd.f32 %v231, %v232
    %v234 = vsel %vm207, %v157, 0.0
    %v235 = vadd.f32 %v233, %v234
    %v236 = vsel %vm207, %v63, 0.0
    %v237 = vsel %vm207, %v97, 0.0
    %v238 = vadd.f32 %v236, %v237
    %v239 = vsel %vm207, %v131, 0.0
    %v240 = vadd.f32 %v238, %v239
    %v241 = vsel %vm207, %v165, 0.0
    %v242 = vadd.f32 %v240, %v241
    %v243 = vsel %vm207, %v71, 0.0
    %v244 = vsel %vm207, %v105, 0.0
    %v245 = vadd.f32 %v243, %v244
    %v246 = vsel %vm207, %v139, 0.0
    %v247 = vadd.f32 %v245, %v246
    %v248 = vsel %vm207, %v173, 0.0
    %v249 = vadd.f32 %v247, %v248
    %v250 = vsel %vm207, %v70, 0.0
    %v251 = vsel %vm207, %v104, 0.0
    %v252 = vadd.f32 %v250, %v251
    %v253 = vsel %vm207, %v138, 0.0
    %v254 = vadd.f32 %v252, %v253
    %v255 = vsel %vm207, %v172, 0.0
    %v256 = vadd.f32 %v254, %v255
    %v257 = vsel %vm207, %v72, 0.0
    %v258 = vsel %vm207, %v106, 0.0
    %v259 = vadd.f32 %v257, %v258
    %v260 = vsel %vm207, %v140, 0.0
    %v261 = vadd.f32 %v259, %v260
    %v262 = vsel %vm207, %v174, 0.0
    %v263 = vadd.f32 %v261, %v262
    %v264 = vrcp.pop 4.0
    %v265 = vmul.f32 %v214, %v264
    %v266 = vmul.f32 %v221, %v264
    %v267 = vmul.f32 %v228, %v264
    %v268 = vmul.f32 %v235, %v264
    %v269 = vmul.f32 %v242, %v264
    %v270 = vmul.f32 %v249, %v264
    %v271 = vmul.f32 %v256, %v264
    %v272 = vmul.f32 %v263, %v264
    %v281 = vcombine.low %v265, %v266
    %v282 = vcombine.low %v267, %v268
    %v284 = vunpack.c.l.s4 1983009808
    %v285 = vunpack.c.0.s8 %v284
    %v286 = vlaneseq
    %v287 = vshrl.u32 %v286, 7
    %v288 = vsub.s32 %v285, %v287
    %v289 = vrot.slane %v281, %v288
    %v291 = vunpack.c.l.s4 1983009808
    %v292 = vunpack.c.0.s8 %v291
    %v293 = vlaneseq
    %v294 = vshrl.u32 %v293, 7
    %v295 = vsub.s32 %v292, %v294
    %v296 = vrot.slane %v282, %v295
    %v297 = vcombine.low %v289, %v296
    %v298 = vcombine.low %v269, %v270
    %v299 = vcombine.low %v271, %v272
    %v301 = vunpack.c.l.s4 1983009808
    %v302 = vunpack.c.0.s8 %v301
    %v303 = vlaneseq
    %v304 = vshrl.u32 %v303, 7
    %v305 = vsub.s32 %v302, %v304
    %v306 = vrot.slane %v298, %v305
    %v308 = vunpack.c.l.s4 1983009808
    %v309 = vunpack.c.0.s8 %v308
    %v310 = vlaneseq
    %v311 = vshrl.u32 %v310, 7
    %v312 = vsub.s32 %v309, %v311
    %v313 = vrot.slane %v299, %v312
    %v314 = vcombine.low %v306, %v313
    %v317 = vsub.f32 %v23, %v297
    %v318 = vsub.f32 %v24, %v314
    %v319 = vsub.f32 %v25, %v297
    %v320 = vsub.f32 %v26, %v314
    %v321 = vsub.f32 %v27, %v297
    %v322 = vsub.f32 %v28, %v314
    %v323 = vsub.f32 %v29, %v297
    %v324 = vsub.f32 %v30, %v314
    %v325 = vmul.f32 %v317, %v317
    %v326 = vmul.f32 %v318, %v318
    %v327 = vmul.f32 %v319, %v319
    %v328 = vmul.f32 %v320, %v320
    %v329 = vmul.f32 %v321, %v321
    %v330 = vmul.f32 %v322, %v322
    %v331 = vmul.f32 %v323, %v323
    %v332 = vmul.f32 %v324, %v324
    %v341 = vcombine.high %v325, %v325
    %v343 = vunpack.c.l.s4 1983009808
    %v344 = vunpack.c.0.s8 %v343
    %v345 = vlaneseq
    %v346 = vshrl.u32 %v345, 7
    %v347 = vsub.s32 %v344, %v346
    %v348 = vrot.slane %v325, %v347
    %v350 = vunpack.c.l.s4 1983009808
    %v351 = vunpack.c.0.s8 %v350
    %v352 = vlaneseq
    %v353 = vshrl.u32 %v352, 7
    %v354 = vsub.s32 %v351, %v353
    %v355 = vrot.slane %v341, %v354
    %v356 = vcombine.high %v348, %v348
    %v357 = vcombine.high %v355, %v355
    %v358 = vcombine.high %v326, %v326
    %v360 = vunpack.c.l.s4 1983009808
    %v361 = vunpack.c.0.s8 %v360
    %v362 = vlaneseq
    %v363 = vshrl.u32 %v362, 7
    %v364 = vsub.s32 %v361, %v363
    %v365 = vrot.slane %v326, %v364
    %v367 = vunpack.c.l.s4 1983009808
    %v368 = vunpack.c.0.s8 %v367
    %v369 = vlaneseq
    %v370 = vshrl.u32 %v369, 7
    %v371 = vsub.s32 %v368, %v370
    %v372 = vrot.slane %v358, %v371
    %v373 = vcombine.high %v365, %v365
    %v374 = vcombine.high %v372, %v372
    %v375 = vcombine.high %v327, %v327
    %v377 = vunpack.c.l.s4 1983009808
    %v378 = vunpack.c.0.s8 %v377
    %v379 = vlaneseq
    %v380 = vshrl.u32 %v379, 7
    %v381 = vsub.s32 %v378, %v380
    %v382 = vrot.slane %v327, %v381
    %v384 = vunpack.c.l.s4 1983009808
    %v385 = vunpack.c.0.s8 %v384
    %v386 = vlaneseq
    %v387 = vshrl.u32 %v386, 7
    %v388 = vsub.s32 %v385, %v387
    %v389 = vrot.slane %v375, %v388
    %v390 = vcombine.high %v382, %v382
    %v391 = vcombine.high %v389, %v389
    %v392 = vcombine.high %v328, %v328
    %v394 = vunpack.c.l.s4 1983009808
    %v395 = vunpack.c.0.s8 %v394
    %v396 = vlaneseq
    %v397 = vshrl.u32 %v396, 7
    %v398 = vsub.s32 %v395, %v397
    %v399 = vrot.slane %v328, %v398
    %v401 = vunpack.c.l.s4 1983009808
    %v402 = vunpack.c.0.s8 %v401
    %v403 = vlaneseq
    %v404 = vshrl.u32 %v403, 7
    %v405 = vsub.s32 %v402, %v404
    %v406 = vrot.slane %v392, %v405
    %v407 = vcombine.high %v399, %v399
    %v408 = vcombine.high %v406, %v406
    %v409 = vcombine.high %v329, %v329
    %v411 = vunpack.c.l.s4 1983009808
    %v412 = vunpack.c.0.s8 %v411
    %v413 = vlaneseq
    %v414 = vshrl.u32 %v413, 7
    %v415 = vsub.s32 %v412, %v414
    %v416 = vrot.slane %v329, %v415
    %v418 = vunpack.c.l.s4 1983009808
    %v419 = vunpack.c.0.s8 %v418
    %v420 = vlaneseq
    %v421 = vshrl.u32 %v420, 7
    %v422 = vsub.s32 %v419, %v421
    %v423 = vrot.slane %v409, %v422
    %v424 = vcombine.high %v416, %v416
    %v425 = vcombine.high %v423, %v423
    %v426 = vcombine.high %v330, %v330
    %v428 = vunpack.c.l.s4 1983009808
    %v429 = vunpack.c.0.s8 %v428
    %v430 = vlaneseq
    %v431 = vshrl.u32 %v430, 7
    %v432 = vsub.s32 %v429, %v431
    %v433 = vrot.slane %v330, %v432
    %v435 = vunpack.c.l.s4 1983009808
    %v436 = vunpack.c.0.s8 %v435
    %v437 = vlaneseq
    %v438 = vshrl.u32 %v437, 7
    %v439 = vsub.s32 %v436, %v438
    %v440 = vrot.slane %v426, %v439
    %v441 = vcombine.high %v433, %v433
    %v442 = vcombine.high %v440, %v440
    %v443 = vcombine.high %v331, %v331
    %v445 = vunpack.c.l.s4 1983009808
    %v446 = vunpack.c.0.s8 %v445
    %v447 = vlaneseq
    %v448 = vshrl.u32 %v447, 7
    %v449 = vsub.s32 %v446, %v448
    %v450 = vrot.slane %v331, %v449
    %v452 = vunpack.c.l.s4 1983009808
    %v453 = vunpack.c.0.s8 %v452
    %v454 = vlaneseq
    %v455 = vshrl.u32 %v454, 7
    %v456 = vsub.s32 %v453, %v455
    %v457 = vrot.slane %v443, %v456
    %v458 = vcombine.high %v450, %v450
    %v459 = vcombine.high %v457, %v457
    %v460 = vcombine.high %v332, %v332
    %v462 = vunpack.c.l.s4 1983009808
    %v463 = vunpack.c.0.s8 %v462
    %v464 = vlaneseq
    %v465 = vshrl.u32 %v464, 7
    %v466 = vsub.s32 %v463, %v465
    %v467 = vrot.slane %v332, %v466
    %v469 = vunpack.c.l.s4 1983009808
    %v470 = vunpack.c.0.s8 %v469
    %v471 = vlaneseq
    %v472 = vshrl.u32 %v471, 7
    %v473 = vsub.s32 %v470, %v472
    %v474 = vrot.slane %v460, %v473
    %v475 = vcombine.high %v467, %v467
    %v476 = vcombine.high %v474, %v474
    %v509 = vsel %vm207, %v348, 0.0
    %v510 = vsel %vm207, %v382, 0.0
    %v511 = vadd.f32 %v509, %v510
    %v512 = vsel %vm207, %v416, 0.0
    %v513 = vadd.f32 %v511, %v512
    %v514 = vsel %vm207, %v450, 0.0
    %v515 = vadd.f32 %v513, %v514
    %v516 = vsel %vm207, %v356, 0.0
    %v517 = vsel %vm207, %v390, 0.0
    %v518 = vadd.f32 %v516, %v517
    %v519 = vsel %vm207, %v424, 0.0
    %v520 = vadd.f32 %v518, %v519
    %v521 = vsel %vm207, %v458, 0.0
    %v522 = vadd.f32 %v520, %v521
    %v523 = vsel %vm207, %v355, 0.0
    %v524 = vsel %vm207, %v389, 0.0
    %v525 = vadd.f32 %v523, %v524
    %v526 = vsel %vm207, %v423, 0.0
    %v527 = vadd.f32 %v525, %v526
    %v528 = vsel %vm207, %v457, 0.0
    %v529 = vadd.f32 %v527, %v528
    %v530 = vsel %vm207, %v357, 0.0
    %v531 = vsel %vm207, %v391, 0.0
    %v532 = vadd.f32 %v530, %v531
    %v533 = vsel %vm207, %v425, 0.0
    %v534 = vadd.f32 %v532, %v533
    %v535 = vsel %vm207, %v459, 0.0
    %v536 = vadd.f32 %v534, %v535
    %v537 = vsel %vm207, %v365, 0.0
    %v538 = vsel %vm207, %v399, 0.0
    %v539 = vadd.f32 %v537, %v538
    %v540 = vsel %vm207, %v433, 0.0
    %v541 = vadd.f32 %v539, %v540
    %v542 = vsel %vm207, %v467, 0.0
    %v543 = vadd.f32 %v541, %v542
    %v544 = vsel %vm207, %v373, 0.0
    %v545 = vsel %vm207, %v407, 0.0
    %v546 = vadd.f32 %v544, %v545
    %v547 = vsel %vm207, %v441, 0.0
    %v548 = vadd.f32 %v546, %v547
    %v549 = vsel %vm207, %v475, 0.0
    %v550 = vadd.f32 %v548, %v549
    %v551 = vsel %vm207, %v372, 0.0
    %v552 = vsel %vm207, %v406, 0.0
    %v553 = vadd.f32 %v551, %v552
    %v554 = vsel %vm207, %v440, 0.0
    %v555 = vadd.f32 %v553, %v554
    %v556 = vsel %vm207, %v474, 0.0
    %v557 = vadd.f32 %v555, %v556
    %v558 = vsel %vm207, %v374, 0.0
    %v559 = vsel %vm207, %v408, 0.0
    %v560 = vadd.f32 %v558, %v559
    %v561 = vsel %vm207, %v442, 0.0
    %v562 = vadd.f32 %v560, %v561
    %v563 = vsel %vm207, %v476, 0.0
    %v564 = vadd.f32 %v562, %v563
    %v565 = vmul.f32 %v515, %v264
    %v566 = vmul.f32 %v522, %v264
    %v567 = vmul.f32 %v529, %v264
    %v568 = vmul.f32 %v536, %v264
    %v569 = vmul.f32 %v543, %v264
    %v570 = vmul.f32 %v550, %v264
    %v571 = vmul.f32 %v557, %v264
    %v572 = vmul.f32 %v564, %v264
    %v573 = vadd.f32 %v565, 1e-08
    %v574 = vadd.f32 %v566, 1e-08
    %v575 = vadd.f32 %v567, 1e-08
    %v576 = vadd.f32 %v568, 1e-08
    %v577 = vadd.f32 %v569, 1e-08
    %v578 = vadd.f32 %v570, 1e-08
    %v579 = vadd.f32 %v571, 1e-08
    %v580 = vadd.f32 %v572, 1e-08
    %v581 = vrsqrt.pop %v573
    %v582 = vmul.f32 %v573, %v581
    %vm583 = vcmp.eq.f32.partialorder %v573, inf
    %v584 = vsel %vm583, %v573, %v582
    %vm585 = vcmp.eq.f32.partialorder %v573, 0.0
    %v586 = vand.u32 %v573, 2147483648
    %v587 = vsel %vm585, %v586, %v584
    %v588 = vrsqrt.pop %v574
    %v589 = vmul.f32 %v574, %v588
    %vm590 = vcmp.eq.f32.partialorder %v574, inf
    %v591 = vsel %vm590, %v574, %v589
    %vm592 = vcmp.eq.f32.partialorder %v574, 0.0
    %v593 = vand.u32 %v574, 2147483648
    %v594 = vsel %vm592, %v593, %v591
    %v595 = vrsqrt.pop %v575
    %v596 = vmul.f32 %v575, %v595
    %vm597 = vcmp.eq.f32.partialorder %v575, inf
    %v598 = vsel %vm597, %v575, %v596
    %vm599 = vcmp.eq.f32.partialorder %v575, 0.0
    %v600 = vand.u32 %v575, 2147483648
    %v601 = vsel %vm599, %v600, %v598
    %v602 = vrsqrt.pop %v576
    %v603 = vmul.f32 %v576, %v602
    %vm604 = vcmp.eq.f32.partialorder %v576, inf
    %v605 = vsel %vm604, %v576, %v603
    %vm606 = vcmp.eq.f32.partialorder %v576, 0.0
    %v607 = vand.u32 %v576, 2147483648
    %v608 = vsel %vm606, %v607, %v605
    %v609 = vrsqrt.pop %v577
    %v610 = vmul.f32 %v577, %v609
    %vm611 = vcmp.eq.f32.partialorder %v577, inf
    %v612 = vsel %vm611, %v577, %v610
    %vm613 = vcmp.eq.f32.partialorder %v577, 0.0
    %v614 = vand.u32 %v577, 2147483648
    %v615 = vsel %vm613, %v614, %v612
    %v616 = vrsqrt.pop %v578
    %v617 = vmul.f32 %v578, %v616
    %vm618 = vcmp.eq.f32.partialorder %v578, inf
    %v619 = vsel %vm618, %v578, %v617
    %vm620 = vcmp.eq.f32.partialorder %v578, 0.0
    %v621 = vand.u32 %v578, 2147483648
    %v622 = vsel %vm620, %v621, %v619
    %v623 = vrsqrt.pop %v579
    %v624 = vmul.f32 %v579, %v623
    %vm625 = vcmp.eq.f32.partialorder %v579, inf
    %v626 = vsel %vm625, %v579, %v624
    %vm627 = vcmp.eq.f32.partialorder %v579, 0.0
    %v628 = vand.u32 %v579, 2147483648
    %v629 = vsel %vm627, %v628, %v626
    %v630 = vrsqrt.pop %v580
    %v631 = vmul.f32 %v580, %v630
    %vm632 = vcmp.eq.f32.partialorder %v580, inf
    %v633 = vsel %vm632, %v580, %v631
    %vm634 = vcmp.eq.f32.partialorder %v580, 0.0
    %v635 = vand.u32 %v580, 2147483648
    %v636 = vsel %vm634, %v635, %v633
    %v637 = vsel %vm207, %v587, 0.0
    %v638 = vsel %vm207, %v594, 0.0
    %v639 = vadd.f32 %v637, %v638
    %v640 = vsel %vm207, %v601, 0.0
    %v641 = vadd.f32 %v639, %v640
    %v642 = vsel %vm207, %v608, 0.0
    %v643 = vadd.f32 %v641, %v642
    %v644 = vsel %vm207, %v615, 0.0
    %v645 = vadd.f32 %v643, %v644
    %v646 = vsel %vm207, %v622, 0.0
    %v647 = vadd.f32 %v645, %v646
    %v648 = vsel %vm207, %v629, 0.0
    %v649 = vadd.f32 %v647, %v648
    %v650 = vsel %vm207, %v636, 0.0
    %v651 = vadd.f32 %v649, %v650
    %652 = vadd.xlane.f32.xlu0 %v651
    %v653 = vpop.xlane.xlu0 %652
    %v654 = vmul.f32 %v653, 0.0009765625
    %v663 = vcombine.high %v317, %v317
    %v665 = vunpack.c.l.s4 1983009808
    %v666 = vunpack.c.0.s8 %v665
    %v667 = vlaneseq
    %v668 = vshrl.u32 %v667, 7
    %v669 = vsub.s32 %v666, %v668
    %v670 = vrot.slane %v317, %v669
    %v672 = vunpack.c.l.s4 1983009808
    %v673 = vunpack.c.0.s8 %v672
    %v674 = vlaneseq
    %v675 = vshrl.u32 %v674, 7
    %v676 = vsub.s32 %v673, %v675
    %v677 = vrot.slane %v663, %v676
    %v678 = vcombine.high %v670, %v670
    %v679 = vcombine.high %v677, %v677
    %v680 = vcombine.high %v318, %v318
    %v682 = vunpack.c.l.s4 1983009808
    %v683 = vunpack.c.0.s8 %v682
    %v684 = vlaneseq
    %v685 = vshrl.u32 %v684, 7
    %v686 = vsub.s32 %v683, %v685
    %v687 = vrot.slane %v318, %v686
    %v689 = vunpack.c.l.s4 1983009808
    %v690 = vunpack.c.0.s8 %v689
    %v691 = vlaneseq
    %v692 = vshrl.u32 %v691, 7
    %v693 = vsub.s32 %v690, %v692
    %v694 = vrot.slane %v680, %v693
    %v695 = vcombine.high %v687, %v687
    %v696 = vcombine.high %v694, %v694
    %v697 = vcombine.high %v319, %v319
    %v699 = vunpack.c.l.s4 1983009808
    %v700 = vunpack.c.0.s8 %v699
    %v701 = vlaneseq
    %v702 = vshrl.u32 %v701, 7
    %v703 = vsub.s32 %v700, %v702
    %v704 = vrot.slane %v319, %v703
    %v706 = vunpack.c.l.s4 1983009808
    %v707 = vunpack.c.0.s8 %v706
    %v708 = vlaneseq
    %v709 = vshrl.u32 %v708, 7
    %v710 = vsub.s32 %v707, %v709
    %v711 = vrot.slane %v697, %v710
    %v712 = vcombine.high %v704, %v704
    %v713 = vcombine.high %v711, %v711
    %v714 = vcombine.high %v320, %v320
    %v716 = vunpack.c.l.s4 1983009808
    %v717 = vunpack.c.0.s8 %v716
    %v718 = vlaneseq
    %v719 = vshrl.u32 %v718, 7
    %v720 = vsub.s32 %v717, %v719
    %v721 = vrot.slane %v320, %v720
    %v723 = vunpack.c.l.s4 1983009808
    %v724 = vunpack.c.0.s8 %v723
    %v725 = vlaneseq
    %v726 = vshrl.u32 %v725, 7
    %v727 = vsub.s32 %v724, %v726
    %v728 = vrot.slane %v714, %v727
    %v729 = vcombine.high %v721, %v721
    %v730 = vcombine.high %v728, %v728
    %v731 = vcombine.high %v321, %v321
    %v733 = vunpack.c.l.s4 1983009808
    %v734 = vunpack.c.0.s8 %v733
    %v735 = vlaneseq
    %v736 = vshrl.u32 %v735, 7
    %v737 = vsub.s32 %v734, %v736
    %v738 = vrot.slane %v321, %v737
    %v740 = vunpack.c.l.s4 1983009808
    %v741 = vunpack.c.0.s8 %v740
    %v742 = vlaneseq
    %v743 = vshrl.u32 %v742, 7
    %v744 = vsub.s32 %v741, %v743
    %v745 = vrot.slane %v731, %v744
    %v746 = vcombine.high %v738, %v738
    %v747 = vcombine.high %v745, %v745
    %v748 = vcombine.high %v322, %v322
    %v750 = vunpack.c.l.s4 1983009808
    %v751 = vunpack.c.0.s8 %v750
    %v752 = vlaneseq
    %v753 = vshrl.u32 %v752, 7
    %v754 = vsub.s32 %v751, %v753
    %v755 = vrot.slane %v322, %v754
    %v757 = vunpack.c.l.s4 1983009808
    %v758 = vunpack.c.0.s8 %v757
    %v759 = vlaneseq
    %v760 = vshrl.u32 %v759, 7
    %v761 = vsub.s32 %v758, %v760
    %v762 = vrot.slane %v748, %v761
    %v763 = vcombine.high %v755, %v755
    %v764 = vcombine.high %v762, %v762
    %v765 = vcombine.high %v323, %v323
    %v767 = vunpack.c.l.s4 1983009808
    %v768 = vunpack.c.0.s8 %v767
    %v769 = vlaneseq
    %v770 = vshrl.u32 %v769, 7
    %v771 = vsub.s32 %v768, %v770
    %v772 = vrot.slane %v323, %v771
    %v774 = vunpack.c.l.s4 1983009808
    %v775 = vunpack.c.0.s8 %v774
    %v776 = vlaneseq
    %v777 = vshrl.u32 %v776, 7
    %v778 = vsub.s32 %v775, %v777
    %v779 = vrot.slane %v765, %v778
    %v780 = vcombine.high %v772, %v772
    %v781 = vcombine.high %v779, %v779
    %v782 = vcombine.high %v324, %v324
    %v784 = vunpack.c.l.s4 1983009808
    %v785 = vunpack.c.0.s8 %v784
    %v786 = vlaneseq
    %v787 = vshrl.u32 %v786, 7
    %v788 = vsub.s32 %v785, %v787
    %v789 = vrot.slane %v324, %v788
    %v791 = vunpack.c.l.s4 1983009808
    %v792 = vunpack.c.0.s8 %v791
    %v793 = vlaneseq
    %v794 = vshrl.u32 %v793, 7
    %v795 = vsub.s32 %v792, %v794
    %v796 = vrot.slane %v782, %v795
    %v797 = vcombine.high %v789, %v789
    %v798 = vcombine.high %v796, %v796
    %v800 = vcombine.low %v670, %v678
    %v801 = vcombine.low %v677, %v679
    %v803 = vunpack.c.l.s4 1983009808
    %v804 = vunpack.c.0.s8 %v803
    %v805 = vlaneseq
    %v806 = vshrl.u32 %v805, 7
    %v807 = vsub.s32 %v804, %v806
    %v808 = vrot.slane %v800, %v807
    %v810 = vunpack.c.l.s4 1983009808
    %v811 = vunpack.c.0.s8 %v810
    %v812 = vlaneseq
    %v813 = vshrl.u32 %v812, 7
    %v814 = vsub.s32 %v811, %v813
    %v815 = vrot.slane %v801, %v814
    %v816 = vcombine.low %v808, %v815
    %v817 = vcombine.low %v687, %v695
    %v818 = vcombine.low %v694, %v696
    %v820 = vunpack.c.l.s4 1983009808
    %v821 = vunpack.c.0.s8 %v820
    %v822 = vlaneseq
    %v823 = vshrl.u32 %v822, 7
    %v824 = vsub.s32 %v821, %v823
    %v825 = vrot.slane %v817, %v824
    %v827 = vunpack.c.l.s4 1983009808
    %v828 = vunpack.c.0.s8 %v827
    %v829 = vlaneseq
    %v830 = vshrl.u32 %v829, 7
    %v831 = vsub.s32 %v828, %v830
    %v832 = vrot.slane %v818, %v831
    %v833 = vcombine.low %v825, %v832
    %v834 = vcombine.low %v654, %v654
    %v836 = vunpack.c.l.s4 1983009808
    %v837 = vunpack.c.0.s8 %v836
    %v838 = vlaneseq
    %v839 = vshrl.u32 %v838, 7
    %v840 = vsub.s32 %v837, %v839
    %v841 = vrot.slane %v834, %v840
    %v842 = vcombine.low %v704, %v712
    %v843 = vcombine.low %v711, %v713
    %v845 = vunpack.c.l.s4 1983009808
    %v846 = vunpack.c.0.s8 %v845
    %v847 = vlaneseq
    %v848 = vshrl.u32 %v847, 7
    %v849 = vsub.s32 %v846, %v848
    %v850 = vrot.slane %v842, %v849
    %v852 = vunpack.c.l.s4 1983009808
    %v853 = vunpack.c.0.s8 %v852
    %v854 = vlaneseq
    %v855 = vshrl.u32 %v854, 7
    %v856 = vsub.s32 %v853, %v855
    %v857 = vrot.slane %v843, %v856
    %v858 = vcombine.low %v850, %v857
    %v859 = vcombine.low %v721, %v729
    %v860 = vcombine.low %v728, %v730
    %v862 = vunpack.c.l.s4 1983009808
    %v863 = vunpack.c.0.s8 %v862
    %v864 = vlaneseq
    %v865 = vshrl.u32 %v864, 7
    %v866 = vsub.s32 %v863, %v865
    %v867 = vrot.slane %v859, %v866
    %v869 = vunpack.c.l.s4 1983009808
    %v870 = vunpack.c.0.s8 %v869
    %v871 = vlaneseq
    %v872 = vshrl.u32 %v871, 7
    %v873 = vsub.s32 %v870, %v872
    %v874 = vrot.slane %v860, %v873
    %v875 = vcombine.low %v867, %v874
    %v876 = vcombine.low %v738, %v746
    %v877 = vcombine.low %v745, %v747
    %v879 = vunpack.c.l.s4 1983009808
    %v880 = vunpack.c.0.s8 %v879
    %v881 = vlaneseq
    %v882 = vshrl.u32 %v881, 7
    %v883 = vsub.s32 %v880, %v882
    %v884 = vrot.slane %v876, %v883
    %v886 = vunpack.c.l.s4 1983009808
    %v887 = vunpack.c.0.s8 %v886
    %v888 = vlaneseq
    %v889 = vshrl.u32 %v888, 7
    %v890 = vsub.s32 %v887, %v889
    %v891 = vrot.slane %v877, %v890
    %v892 = vcombine.low %v884, %v891
    %v893 = vcombine.low %v755, %v763
    %v894 = vcombine.low %v762, %v764
    %v896 = vunpack.c.l.s4 1983009808
    %v897 = vunpack.c.0.s8 %v896
    %v898 = vlaneseq
    %v899 = vshrl.u32 %v898, 7
    %v900 = vsub.s32 %v897, %v899
    %v901 = vrot.slane %v893, %v900
    %v903 = vunpack.c.l.s4 1983009808
    %v904 = vunpack.c.0.s8 %v903
    %v905 = vlaneseq
    %v906 = vshrl.u32 %v905, 7
    %v907 = vsub.s32 %v904, %v906
    %v908 = vrot.slane %v894, %v907
    %v909 = vcombine.low %v901, %v908
    %v910 = vcombine.low %v772, %v780
    %v911 = vcombine.low %v779, %v781
    %v913 = vunpack.c.l.s4 1983009808
    %v914 = vunpack.c.0.s8 %v913
    %v915 = vlaneseq
    %v916 = vshrl.u32 %v915, 7
    %v917 = vsub.s32 %v914, %v916
    %v918 = vrot.slane %v910, %v917
    %v920 = vunpack.c.l.s4 1983009808
    %v921 = vunpack.c.0.s8 %v920
    %v922 = vlaneseq
    %v923 = vshrl.u32 %v922, 7
    %v924 = vsub.s32 %v921, %v923
    %v925 = vrot.slane %v911, %v924
    %v926 = vcombine.low %v918, %v925
    %v927 = vcombine.low %v789, %v797
    %v928 = vcombine.low %v796, %v798
    %v930 = vunpack.c.l.s4 1983009808
    %v931 = vunpack.c.0.s8 %v930
    %v932 = vlaneseq
    %v933 = vshrl.u32 %v932, 7
    %v934 = vsub.s32 %v931, %v933
    %v935 = vrot.slane %v927, %v934
    %v937 = vunpack.c.l.s4 1983009808
    %v938 = vunpack.c.0.s8 %v937
    %v939 = vlaneseq
    %v940 = vshrl.u32 %v939, 7
    %v941 = vsub.s32 %v938, %v940
    %v942 = vrot.slane %v928, %v941
    %v943 = vcombine.low %v935, %v942
    %953 = vst [vmem:[#allocation5] sm:$0xff] %v816
    %954 = vst [vmem:[#allocation5 + $0x8] sm:$0xff] %v833
    %955 = vst [vmem:[#allocation5 + $0x10] sm:$0xf] %v841
    %956 = vst [vmem:[#allocation5 + $0x14] sm:$0xff] %v858
    %957 = vst [vmem:[#allocation5 + $0x1c] sm:$0xff] %v875
    %958 = vst [vmem:[#allocation5 + $0x24] sm:$0xf] %v841
    %959 = vst [vmem:[#allocation5 + $0x28] sm:$0xff] %v892
    %960 = vst [vmem:[#allocation5 + $0x30] sm:$0xff] %v909
    %961 = vst [vmem:[#allocation5 + $0x38] sm:$0xf] %v841
    %962 = vst [vmem:[#allocation5 + $0x3c] sm:$0xff] %v926
    %963 = vst [vmem:[#allocation5 + $0x44] sm:$0xff] %v943
    %964 = vst [vmem:[#allocation5 + $0x4c] sm:$0xf] %v841
    // Predicated region
    $region10: #{tpu_custom_call.1} parent=1 // pred_check
      _
    $region11: #{tpu_custom_call.1} parent=1 // pred_check_branch
      %966 = sbr.rel (0) target = $region13
    $region12: #{tpu_custom_call.1} parent=1 // pred_region
      %s968 = ssub.s32 1280, 1280
      %969 = vsyncadd [#allocation4], %s968
      %s970 = sshll.u32 [#allocation5], 4
      %s971 = int_to_ptr.vmem [resolvable:$true] %s970
      %976 = dma.vmem_to_hbm [thread:$0]  %s971, 1280, %s1, [#allocation4], 320, 320, 20
    $region13: #{tpu_custom_call.1} parent=1 // pred_fallthru
      _
    // Predicated region
    $region14: #{tpu_custom_call.1} parent=1 // pred_check
      _
    $region15: #{tpu_custom_call.1} parent=1 // pred_check_branch
      %978 = sbr.rel (0) target = $region17
    $region16: #{tpu_custom_call.1} parent=1 // pred_region
      %979 = dma.done [#allocation4], 1280
    $region17: #{tpu_custom_call.1} parent=1 // pred_fallthru
      _
    %980 = vsyncpa [#allocation3], 1
    %981 = vsyncpa [#allocation4], 1

</llo_original>
